<compile_context>
chip_gen: v5e
topology: v5e:2x2
jax: 0.10.0
libtpu: 0.0.40
codegen_flags: <defaults>
</compile_context>

<pallas_src>
import functools

import jax
import jax.numpy as jnp
from jax.experimental import pallas as pl
from jax.experimental.pallas import tpu as pltpu


# ---------------------------------------------------------------------------
# Tiling policy.
# Conservative per-kernel VMEM budget that fits every chip's default scoped
# VMEM (16 MiB v5e, 32 MiB v6e, 32 MiB default / 64 MiB physical on v7x).
_VMEM_BUDGET = 8 * 1024 * 1024
_TILE_CAP = 4096            # max rows per grid step
_MIN_SPLIT_BATCH = 256      # below this, 1 tile: step overhead > idle-TC cost


def _critic_kernel(s_ref, a_ref, w1s_ref, w1a_ref, b1_ref, w2_ref, b2_ref,
                   w3_ref, b3_ref, q_ref):
    wdt = w1s_ref.dtype  # matmul operand dtype (f32 or bf16); cast is in-VMEM.

    # fc1: split-weight matmuls replace the host-side concat([state, action]).
    h1 = jnp.dot(s_ref[...].astype(wdt), w1s_ref[...],
                 preferred_element_type=jnp.float32)
    h1 = h1 + jnp.dot(a_ref[...].astype(wdt), w1a_ref[...],
                      preferred_element_type=jnp.float32)
    h1 = jnp.maximum(h1 + b1_ref[...], 0.0)                    # [tile_b, F1] f32

    # fc2
    h2 = jnp.dot(h1.astype(w2_ref.dtype), w2_ref[...],
                 preferred_element_type=jnp.float32)
    h2 = jnp.maximum(h2 + b2_ref[...], 0.0)                    # [tile_b, F2] f32

    # Qvalue: plain [tile_b, F2] @ [F2, 1] — no transpose of h2; the masked
    # (tile_b, 1) store is only tile_b*4 bytes per tile.
    q = jnp.dot(h2, w3_ref[...], preferred_element_type=jnp.float32)
    q_ref[...] = (q + b3_ref[...]).astype(q_ref.dtype)


def _choose_tile(batch, in_bytes_per_row, f1, f2, weight_bytes):
    """Pick (tile_b, num_tiles) from the VMEM budget and megacore balance."""
    # Per-row footprint: double-buffered input tiles + f32 h1/h2 intermediates
    # + double-buffered f32 output column.
    per_row = 2 * in_bytes_per_row + 4 * (f1 + f2) + 2 * 4
    max_rows = min(_TILE_CAP, max(8, (_VMEM_BUDGET - weight_bytes) // per_row))
    max_rows = (max_rows // 8) * 8

    if batch < _MIN_SPLIT_BATCH:
        # One tile equal to the full batch (block dim == array dim is legal
        # even when not a multiple of 8).
        return batch, 1

    # Even tile count so the "parallel" batch axis load-balances across v7x's
    # two TensorCores; on v5e/v6e the extra grid step costs ~0.35 us.
    num_tiles = max(2, pl.cdiv(batch, max_rows))
    if num_tiles % 2:
        num_tiles += 1
    tile_b = ((pl.cdiv(batch, num_tiles) + 7) // 8) * 8
    num_tiles = pl.cdiv(batch, tile_b)
    return tile_b, num_tiles


def prepare_critic_params(params, input_dims, compute_dtype=jnp.float32):
    """One-time repack of CriticNNs params into kernel layout.

    Call when parameters are created/updated, NOT per forward call, so the
    slice / cast HBM passes are amortized to zero.

    params: (w1[d_in,F1], b1[1,F1], w2[F1,F2], b2[1,F2], w3[F2,1], b3[1,1])
    Only the large matmul weights are cast to compute_dtype; biases and the
    tiny Qvalue weight stay f32 (their DMA cost is negligible, keeps accuracy).
    """
    w1, b1, w2, b2, w3, b3 = params
    return (
        w1[:input_dims].astype(compute_dtype),   # w1_state  [input_dims, F1]
        w1[input_dims:].astype(compute_dtype),   # w1_action [n_actions, F1]
        b1.astype(jnp.float32),
        w2.astype(compute_dtype),                # [F1, F2]
        b2.astype(jnp.float32),
        w3.astype(jnp.float32),                  # [F2, 1] (kept f32)
        b3.astype(jnp.float32),
    )


@jax.jit
def critic_forward(state, action, kparams):
    """Pallas-backed forward of CriticNNs.

    state:   [B, input_dims]  float32
    action:  [B, n_actions]   float32
    kparams: output of prepare_critic_params (already split / cast)
    returns Qvalue: [B, 1]    float32
    """
    w1s, w1a, b1, w2, b2, w3, b3 = kparams
    batch, input_dims = state.shape
    n_actions = action.shape[1]
    f1 = w1s.shape[1]
    f2 = w2.shape[1]

    in_bytes_per_row = (state.dtype.itemsize * input_dims
                        + action.dtype.itemsize * n_actions)
    weight_bytes = sum(int(x.size) * x.dtype.itemsize for x in kparams)
    tile_b, num_tiles = _choose_tile(batch, in_bytes_per_row, f1, f2,
                                     weight_bytes)

    # NOTE: no padding of state/action.  The last grid step may read past the
    # end of the batch; those rows hold arbitrary values but their Q outputs
    # are never stored (masked OOB writeback), so correctness is unaffected.

    covered = tile_b * num_tiles
    flops = 2 * covered * ((input_dims + n_actions) * f1 + f1 * f2 + f2)
    bytes_accessed = batch * in_bytes_per_row + weight_bytes + batch * 4

    vmem_need = (weight_bytes
                 + 2 * tile_b * in_bytes_per_row       # double-buffered inputs
                 + 4 * tile_b * (f1 + f2)              # f32 h1/h2
                 + 2 * tile_b * 4)                     # double-buffered output
    vmem_limit = int(min(32 * 1024 * 1024,
                         max(4 * 1024 * 1024, 2 * vmem_need)))

    q = pl.pallas_call(
        _critic_kernel,
        out_shape=jax.ShapeDtypeStruct((batch, 1), jnp.float32),
        grid=(num_tiles,),
        in_specs=[
            pl.BlockSpec((tile_b, input_dims), lambda i: (i, 0)),  # state tile
            pl.BlockSpec((tile_b, n_actions), lambda i: (i, 0)),   # action tile
            pl.BlockSpec((input_dims, f1), lambda i: (0, 0)),      # w1_state (resident)
            pl.BlockSpec((n_actions, f1), lambda i: (0, 0)),       # w1_action (resident)
            pl.BlockSpec((1, f1), lambda i: (0, 0)),               # b1
            pl.BlockSpec((f1, f2), lambda i: (0, 0)),              # w2 (resident)
            pl.BlockSpec((1, f2), lambda i: (0, 0)),               # b2
            pl.BlockSpec((f2, 1), lambda i: (0, 0)),               # w3 column
            pl.BlockSpec((1, 1), lambda i: (0, 0)),                # b3
        ],
        out_specs=pl.BlockSpec((tile_b, 1), lambda i: (i, 0)),
        compiler_params=pltpu.CompilerParams(
            dimension_semantics=("parallel",),
            vmem_limit_bytes=vmem_limit),
        cost_estimate=pl.CostEstimate(
            flops=flops, transcendentals=0, bytes_accessed=bytes_accessed),
    )(state, action, w1s, w1a, b1, w2, b2, w3, b3)

    return q


def init_critic_params(key, input_dims, fc1_dims, fc2_dims, n_actions):
    """Deterministic synthetic init matching nn.Linear's U(-1/sqrt(fan_in), +)."""
    d_in = input_dims + n_actions

    def linear(key, fan_in, fan_out):
        kw, kb = jax.random.split(key)
        bound = 1.0 / (fan_in ** 0.5)
        w = jax.random.uniform(kw, (fan_in, fan_out), jnp.float32, -bound, bound)
        b = jax.random.uniform(kb, (1, fan_out), jnp.float32, -bound, bound)
        return w, b

    k1, k2, k3 = jax.random.split(key, 3)
    w1, b1 = linear(k1, d_in, fc1_dims)
    w2, b2 = linear(k2, fc1_dims, fc2_dims)
    w3, b3 = linear(k3, fc2_dims, 1)
    return (w1, b1, w2, b2, w3, b3)


def _reference_forward(state, action, params):
    """Pure-JAX reference for correctness check."""
    w1, b1, w2, b2, w3, b3 = params
    x = jnp.concatenate([state, action], axis=1)
    h1 = jnp.maximum(x @ w1 + b1, 0.0)
    h2 = jnp.maximum(h1 @ w2 + b2, 0.0)
    return h2 @ w3 + b3


if __name__ == "__main__":
    # Small shapes consistent with the module's forward.
    batch = 8
    input_dims = 16
    n_actions = 4
    fc1_dims = 32
    fc2_dims = 32

    key = jax.random.PRNGKey(0)
    k_params, k_state, k_action = jax.random.split(key, 3)

    params = init_critic_params(k_params, input_dims, fc1_dims, fc2_dims, n_actions)
    state = jax.random.normal(k_state, (batch, input_dims), jnp.float32)
    action = jax.random.normal(k_action, (batch, n_actions), jnp.float32)

    # One-time param repack (amortized outside the forward pass).
    kparams_f32 = prepare_critic_params(params, input_dims)
    kparams_bf16 = prepare_critic_params(params, input_dims, jnp.bfloat16)

    # f32 path: must match the PyTorch-equivalent reference tightly.
    q = jax.block_until_ready(critic_forward(state, action, kparams_f32))
    q_ref = _reference_forward(state, action, params)
    assert q.shape == (batch, 1), q.shape
    assert jnp.allclose(q, q_ref, atol=1e-5, rtol=1e-5), (q, q_ref)

    # bf16-weight path (halved weight DMA bytes), activations stay f32 in HBM,
    # f32 accumulation, f32 biases/Qvalue weight.
    q_bf16 = jax.block_until_ready(critic_forward(state, action, kparams_bf16))
    assert q_bf16.shape == (batch, 1)
    assert jnp.allclose(q_bf16, q_ref, atol=5e-2, rtol=5e-2), (q_bf16, q_ref)

    # Multi-tile path: exercises the even-count batch grid (balanced across
    # v7x cores), resident weights, and the masked partial final block
    # (no wrapper padding).
    big_batch = 1027
    kb_s, kb_a = jax.random.split(jax.random.PRNGKey(1))
    big_state = jax.random.normal(kb_s, (big_batch, input_dims), jnp.float32)
    big_action = jax.random.normal(kb_a, (big_batch, n_actions), jnp.float32)
    q_big = jax.block_until_ready(critic_forward(big_state, big_action, kparams_f32))
    q_big_ref = _reference_forward(big_state, big_action, params)
    assert q_big.shape == (big_batch, 1), q_big.shape
    assert jnp.allclose(q_big, q_big_ref, atol=1e-4, rtol=1e-4), "big-batch mismatch"

    print("KERNEL_OK")
</pallas_src>

<mosaic_0001>
module attributes {stable_mosaic.version = 11 : i64} {
  func.func @_critic_kernel(%arg0: i32, %arg1: memref<8x16xf32, #tpu.memory_space<vmem>>, %arg2: memref<8x4xf32, #tpu.memory_space<vmem>>, %arg3: memref<16x32xf32, #tpu.memory_space<vmem>>, %arg4: memref<4x32xf32, #tpu.memory_space<vmem>>, %arg5: memref<1x32xf32, #tpu.memory_space<vmem>>, %arg6: memref<32x32xf32, #tpu.memory_space<vmem>>, %arg7: memref<1x32xf32, #tpu.memory_space<vmem>>, %arg8: memref<32x1xf32, #tpu.memory_space<vmem>>, %arg9: memref<1x1xf32, #tpu.memory_space<vmem>>, %arg10: memref<8x1xf32, #tpu.memory_space<vmem>>) attributes {dimension_semantics = [#tpu.dimension_semantics<parallel>], iteration_bounds = array<i64: 1>, scalar_prefetch = 0 : i64, scratch_operands = 0 : i64, tpu.core_type = #tpu.core_type<tc>, window_params = [{transform_indices = @transform_0, window_bounds = array<i64: 8, 16>}, {transform_indices = @transform_1, window_bounds = array<i64: 8, 4>}, {pipeline_mode = #tpu.pipeline_mode<synchronous>, transform_indices = @transform_2, window_bounds = array<i64: 16, 32>}, {pipeline_mode = #tpu.pipeline_mode<synchronous>, transform_indices = @transform_3, window_bounds = array<i64: 4, 32>}, {pipeline_mode = #tpu.pipeline_mode<synchronous>, transform_indices = @transform_4, window_bounds = array<i64: 1, 32>}, {pipeline_mode = #tpu.pipeline_mode<synchronous>, transform_indices = @transform_5, window_bounds = array<i64: 32, 32>}, {pipeline_mode = #tpu.pipeline_mode<synchronous>, transform_indices = @transform_6, window_bounds = array<i64: 1, 32>}, {pipeline_mode = #tpu.pipeline_mode<synchronous>, transform_indices = @transform_7, window_bounds = array<i64: 32, 1>}, {pipeline_mode = #tpu.pipeline_mode<synchronous>, transform_indices = @transform_8, window_bounds = array<i64: 1, 1>}, {transform_indices = @transform_9, window_bounds = array<i64: 8, 1>}]} {
    %c0 = arith.constant 0 : index
    %c0_0 = arith.constant 0 : index
    %0 = vector.load %arg1[%c0, %c0_0] : memref<8x16xf32, #tpu.memory_space<vmem>>, vector<8x16xf32>
    %c0_1 = arith.constant 0 : index
    %c0_2 = arith.constant 0 : index
    %1 = vector.load %arg3[%c0_1, %c0_2] : memref<16x32xf32, #tpu.memory_space<vmem>>, vector<16x32xf32>
    %cst = arith.constant dense<0.000000e+00> : vector<8x32xf32>
    %2 = tpu.matmul %0, %1, %cst {dimension_numbers = #tpu.dot_dimension_numbers<[1], [0], [0], [1], [0, 0, 1, 1], [], []>} : vector<8x16xf32>, vector<16x32xf32>, vector<8x32xf32> -> vector<8x32xf32>
    %c0_3 = arith.constant 0 : index
    %c0_4 = arith.constant 0 : index
    %3 = vector.load %arg2[%c0_3, %c0_4] : memref<8x4xf32, #tpu.memory_space<vmem>>, vector<8x4xf32>
    %c0_5 = arith.constant 0 : index
    %c0_6 = arith.constant 0 : index
    %4 = vector.load %arg4[%c0_5, %c0_6] : memref<4x32xf32, #tpu.memory_space<vmem>>, vector<4x32xf32>
    %cst_7 = arith.constant dense<0.000000e+00> : vector<8x32xf32>
    %5 = tpu.matmul %3, %4, %cst_7 {dimension_numbers = #tpu.dot_dimension_numbers<[1], [0], [0], [1], [0, 0, 1, 1], [], []>} : vector<8x4xf32>, vector<4x32xf32>, vector<8x32xf32> -> vector<8x32xf32>
    %6 = arith.addf %2, %5 : vector<8x32xf32>
    %c0_8 = arith.constant 0 : index
    %c0_9 = arith.constant 0 : index
    %7 = vector.load %arg5[%c0_8, %c0_9] : memref<1x32xf32, #tpu.memory_space<vmem>>, vector<1x32xf32>
    %8 = vector.broadcast %7 : vector<1x32xf32> to vector<8x32xf32>
    %9 = arith.addf %6, %8 : vector<8x32xf32>
    %cst_10 = arith.constant 0.000000e+00 : f32
    %10 = vector.broadcast %cst_10 : f32 to vector<8x32xf32>
    %11 = arith.maximumf %9, %10 : vector<8x32xf32>
    %c0_11 = arith.constant 0 : index
    %c0_12 = arith.constant 0 : index
    %12 = vector.load %arg6[%c0_11, %c0_12] : memref<32x32xf32, #tpu.memory_space<vmem>>, vector<32x32xf32>
    %cst_13 = arith.constant dense<0.000000e+00> : vector<8x32xf32>
    %13 = tpu.matmul %11, %12, %cst_13 {dimension_numbers = #tpu.dot_dimension_numbers<[1], [0], [0], [1], [0, 0, 1, 1], [], []>} : vector<8x32xf32>, vector<32x32xf32>, vector<8x32xf32> -> vector<8x32xf32>
    %c0_14 = arith.constant 0 : index
    %c0_15 = arith.constant 0 : index
    %14 = vector.load %arg7[%c0_14, %c0_15] : memref<1x32xf32, #tpu.memory_space<vmem>>, vector<1x32xf32>
    %15 = vector.broadcast %14 : vector<1x32xf32> to vector<8x32xf32>
    %16 = arith.addf %13, %15 : vector<8x32xf32>
    %cst_16 = arith.constant 0.000000e+00 : f32
    %17 = vector.broadcast %cst_16 : f32 to vector<8x32xf32>
    %18 = arith.maximumf %16, %17 : vector<8x32xf32>
    %c0_17 = arith.constant 0 : index
    %c0_18 = arith.constant 0 : index
    %19 = vector.load %arg8[%c0_17, %c0_18] : memref<32x1xf32, #tpu.memory_space<vmem>>, vector<32x1xf32>
    %cst_19 = arith.constant dense<0.000000e+00> : vector<8x1xf32>
    %20 = tpu.matmul %18, %19, %cst_19 {dimension_numbers = #tpu.dot_dimension_numbers<[1], [0], [0], [1], [0, 0, 1, 1], [], []>} : vector<8x32xf32>, vector<32x1xf32>, vector<8x1xf32> -> vector<8x1xf32>
    %c0_20 = arith.constant 0 : index
    %c0_21 = arith.constant 0 : index
    %21 = vector.load %arg9[%c0_20, %c0_21] : memref<1x1xf32, #tpu.memory_space<vmem>>, vector<1x1xf32>
    %22 = vector.broadcast %21 : vector<1x1xf32> to vector<8x1xf32>
    %23 = arith.addf %20, %22 : vector<8x1xf32>
    %c0_22 = arith.constant 0 : index
    %c0_23 = arith.constant 0 : index
    %24 = vector.load %arg10[%c0_22, %c0_23] : memref<8x1xf32, #tpu.memory_space<vmem>>, vector<8x1xf32>
    tpu.vector_store %arg10[%c0_22, %c0_23], %23 {strides = array<i32>} : memref<8x1xf32, #tpu.memory_space<vmem>>, vector<8x1xf32>,
    return
  }
  func.func @transform_0(%arg0: i32) -> (i32, i32) {
    %c0_i32 = arith.constant 0 : i32
    %c0_i32_0 = arith.constant 0 : i32
    return %arg0, %c0_i32 : i32, i32
  }
  func.func @transform_1(%arg0: i32) -> (i32, i32) {
    %c0_i32 = arith.constant 0 : i32
    %c0_i32_0 = arith.constant 0 : i32
    return %arg0, %c0_i32 : i32, i32
  }
  func.func @transform_2(%arg0: i32) -> (i32, i32) {
    %c0_i32 = arith.constant 0 : i32
    %c0_i32_0 = arith.constant 0 : i32
    %c0_i32_1 = arith.constant 0 : i32
    return %c0_i32, %c0_i32_0 : i32, i32
  }
  func.func @transform_3(%arg0: i32) -> (i32, i32) {
    %c0_i32 = arith.constant 0 : i32
    %c0_i32_0 = arith.constant 0 : i32
    %c0_i32_1 = arith.constant 0 : i32
    return %c0_i32, %c0_i32_0 : i32, i32
  }
  func.func @transform_4(%arg0: i32) -> (i32, i32) {
    %c0_i32 = arith.constant 0 : i32
    %c0_i32_0 = arith.constant 0 : i32
    %c0_i32_1 = arith.constant 0 : i32
    return %c0_i32, %c0_i32_0 : i32, i32
  }
  func.func @transform_5(%arg0: i32) -> (i32, i32) {
    %c0_i32 = arith.constant 0 : i32
    %c0_i32_0 = arith.constant 0 : i32
    %c0_i32_1 = arith.constant 0 : i32
    return %c0_i32, %c0_i32_0 : i32, i32
  }
  func.func @transform_6(%arg0: i32) -> (i32, i32) {
    %c0_i32 = arith.constant 0 : i32
    %c0_i32_0 = arith.constant 0 : i32
    %c0_i32_1 = arith.constant 0 : i32
    return %c0_i32, %c0_i32_0 : i32, i32
  }
  func.func @transform_7(%arg0: i32) -> (i32, i32) {
    %c0_i32 = arith.constant 0 : i32
    %c0_i32_0 = arith.constant 0 : i32
    %c0_i32_1 = arith.constant 0 : i32
    return %c0_i32, %c0_i32_0 : i32, i32
  }
  func.func @transform_8(%arg0: i32) -> (i32, i32) {
    %c0_i32 = arith.constant 0 : i32
    %c0_i32_0 = arith.constant 0 : i32
    %c0_i32_1 = arith.constant 0 : i32
    return %c0_i32, %c0_i32_0 : i32, i32
  }
  func.func @transform_9(%arg0: i32) -> (i32, i32) {
    %c0_i32 = arith.constant 0 : i32
    %c0_i32_0 = arith.constant 0 : i32
    return %arg0, %c0_i32 : i32, i32
  }
}

</mosaic_0001>

<llo_original>
// kernel: critic_forward.1
$region0: #{critic_forward.1}
  #allocation0 [shape = 'u32[]', space=smem, size = 0x4, offset = 0x4, fixed_abs, tag = 'smem constant byte address 0x4 - core index']
  #allocation1 [shape = 'u32[72,128]{1,0:T(1,128)}', space=vmem, size = 0x9000, scoped, tag = 'internal scratch']
  #allocation2 [shape = 'f32[1,1]{1,0:T(1,128)S(1)}', space=vmem, size = 0x200, scoped, tag = 'scoped memory for critic_forward.1']
  %s0 = inlined_call_operand.hbm [shape: f32[8,16], index: 0, kind: input, shape index: {}]
  %s1 = inlined_call_operand.vmem [shape: f32[8,4], index: 1, kind: input, shape index: {}]
  %s2 = inlined_call_operand.vmem [shape: f32[16,32], index: 2, kind: input, shape index: {}]
  %s3 = inlined_call_operand.hbm [shape: f32[4,32], index: 3, kind: input, shape index: {}]
  %s4 = inlined_call_operand.vmem [shape: f32[1,32], index: 4, kind: input, shape index: {}]
  %s5 = inlined_call_operand.vmem [shape: f32[32,32], index: 5, kind: input, shape index: {}]
  %s6 = inlined_call_operand.vmem [shape: f32[1,32], index: 6, kind: input, shape index: {}]
  %s7 = inlined_call_operand.vmem [shape: f32[32,1], index: 7, kind: input, shape index: {}]
  %s8 = inlined_call_operand.<no memory space> [shape: f32[1,1], index: 8, kind: input, shape index: {}]
  %s9 = inlined_call_operand.vmem [shape: f32[8,1], index: 9, kind: output, shape index: {}]
  %s10 = sld [smem:[#allocation0]]
  $region54: #{critic_forward.1} parent=0
    _
  %s12 = ssub.s32 1, %s10
  %s13 = scalar_select 0, %s12, %s10
  %v14 = vstv %s8
  %15 = vst [vmem:[#allocation2] sm:$0x1] %v14
  $region1: #{critic_forward.1} parent=0
    #allocation3 [shape = 'u8[4096]{0}', space=vmem, size = 0x1000, scoped, tag = 'input window, operand 0, single buffered']
    #allocation4 [shape = 's32[1]{0}', space=sflag, size = 0x4, scoped, tag = 'scoped memory for critic_forward.1']
    #allocation5 [shape = 'u8[2048]{0}', space=vmem, size = 0x800, scoped, tag = 'input window, operand 3, single buffered']
    #allocation6 [shape = 's32[1]{0}', space=sflag, size = 0x4, scoped, tag = 'scoped memory for critic_forward.1']
    %16 = vsyncpa [#allocation4], 0
    %17 = vsyncpa [#allocation6], 0
    // Predicated region
    $region2: #{critic_forward.1} parent=1 // pred_check
      _
    $region3: #{critic_forward.1} parent=1 // pred_check_branch
      %19 = sbr.rel (0) target = $region5
    $region4: #{critic_forward.1} parent=1 // pred_region
      %21 = vsyncadd [#allocation4], 0
      %s23 = sshll.u32 %s0, 4
      %s24 = int_to_ptr.hbm [resolvable:$true] %s23
      %s25 = sshll.u32 [#allocation3], 4
      %s26 = int_to_ptr.vmem [resolvable:$true] %s25
      %28 = dma.hbm_to_vmem [thread:$0]  %s24, 128, %s26, [#allocation4]
    $region5: #{critic_forward.1} parent=1 // pred_fallthru
      _
    // Predicated region
    $region6: #{critic_forward.1} parent=1 // pred_check
      _
    $region7: #{critic_forward.1} parent=1 // pred_check_branch
      %30 = sbr.rel (0) target = $region9
    $region8: #{critic_forward.1} parent=1 // pred_region
      _
    $region9: #{critic_forward.1} parent=1 // pred_fallthru
      _
    // Predicated region
    $region10: #{critic_forward.1} parent=1 // pred_check
      _
    $region11: #{critic_forward.1} parent=1 // pred_check_branch
      %32 = sbr.rel (0) target = $region13
    $region12: #{critic_forward.1} parent=1 // pred_region
      _
    $region13: #{critic_forward.1} parent=1 // pred_fallthru
      _
    // Predicated region
    $region14: #{critic_forward.1} parent=1 // pred_check
      _
    $region15: #{critic_forward.1} parent=1 // pred_check_branch
      %34 = sbr.rel (0) target = $region17
    $region16: #{critic_forward.1} parent=1 // pred_region
      %36 = vsyncadd [#allocation6], 0
      %s38 = sshll.u32 %s3, 4
      %s39 = int_to_ptr.hbm [resolvable:$true] %s38
      %s40 = sshll.u32 [#allocation5], 4
      %s41 = int_to_ptr.vmem [resolvable:$true] %s40
      %43 = dma.hbm_to_vmem [thread:$0]  %s39, 64, %s41, [#allocation6]
    $region17: #{critic_forward.1} parent=1 // pred_fallthru
      _
    // Predicated region
    $region18: #{critic_forward.1} parent=1 // pred_check
      _
    $region19: #{critic_forward.1} parent=1 // pred_check_branch
      %45 = sbr.rel (0) target = $region21
    $region20: #{critic_forward.1} parent=1 // pred_region
      _
    $region21: #{critic_forward.1} parent=1 // pred_fallthru
      _
    // Predicated region
    $region22: #{critic_forward.1} parent=1 // pred_check
      _
    $region23: #{critic_forward.1} parent=1 // pred_check_branch
      %47 = sbr.rel (0) target = $region25
    $region24: #{critic_forward.1} parent=1 // pred_region
      _
    $region25: #{critic_forward.1} parent=1 // pred_fallthru
      _
    // Predicated region
    $region26: #{critic_forward.1} parent=1 // pred_check
      _
    $region27: #{critic_forward.1} parent=1 // pred_check_branch
      %49 = sbr.rel (0) target = $region29
    $region28: #{critic_forward.1} parent=1 // pred_region
      _
    $region29: #{critic_forward.1} parent=1 // pred_fallthru
      _
    // Predicated region
    $region30: #{critic_forward.1} parent=1 // pred_check
      _
    $region31: #{critic_forward.1} parent=1 // pred_check_branch
      %51 = sbr.rel (0) target = $region33
    $region32: #{critic_forward.1} parent=1 // pred_region
      _
    $region33: #{critic_forward.1} parent=1 // pred_fallthru
      _
    // Predicated region
    $region34: #{critic_forward.1} parent=1 // pred_check
      _
    $region35: #{critic_forward.1} parent=1 // pred_check_branch
      %53 = sbr.rel (0) target = $region37
    $region36: #{critic_forward.1} parent=1 // pred_region
      _
    $region37: #{critic_forward.1} parent=1 // pred_fallthru
      _
    // Predicated region
    $region38: #{critic_forward.1} parent=1 // pred_check
      _
    $region39: #{critic_forward.1} parent=1 // pred_check_branch
      %55 = sbr.rel (0) target = $region41
    $region40: #{critic_forward.1} parent=1 // pred_region
      %57 = dma.done [#allocation4], 128
    $region41: #{critic_forward.1} parent=1 // pred_fallthru
      _
    // Predicated region
    $region42: #{critic_forward.1} parent=1 // pred_check
      _
    $region43: #{critic_forward.1} parent=1 // pred_check_branch
      %59 = sbr.rel (0) target = $region45
    $region44: #{critic_forward.1} parent=1 // pred_region
      %61 = dma.done [#allocation6], 64
    $region45: #{critic_forward.1} parent=1 // pred_fallthru
      _
    %v62 = vld [vmem:[#allocation3] sm:$0xff]
    %v63 = vld [vmem:[%s2] sm:$0xff]
    %v64 = vld [vmem:[%s2 + $0x8] sm:$0xff]
    %v65 = vld [vmem:[%s1] sm:$0xff]
    %v66 = vld [vmem:[#allocation5] sm:$0xf]
    %vm67 = vcmask 31744
    %v69 = vsel %vm67, %v65, 0
    %vm71 = vcmask 1043456
    %v73 = vsel %vm71, %v66, 0
    %75 = vmatpush.msra.mxu0 0.0
    %76 = vmatpush.msra.mxu0 0.0
    %77 = vmatpush.msra.mxu0 0.0
    %78 = vmatpush.msra.mxu0 0.0
    %79 = vmatpush.msra.mxu0 0.0
    %80 = vmatpush.msra.mxu0 0.0
    %81 = vmatpush.msra.mxu0 0.0
    %82 = vmatpush.msra.mxu0 0.0
    %83 = vmatpush.msra.mxu0 0.0
    %84 = vmatpush.msra.mxu0 0.0
    %85 = vmatpush.msra.mxu0 0.0
    %86 = vmatpush.msra.mxu0 0.0
    %87 = vmatpush.msra.mxu0 0.0
    %88 = vmatpush.msra.mxu0 0.0
    %89 = vmatpush.msra.mxu0 0.0
    %90 = vmatpush.msra.mxu0 %v73
    %91 = vmatmul.f32.gmra.mxu0 %v69
    %v92 = vpop.f32.mrf.mxu0
    %v93 = vadd.f32 0.0, %v92
    %94 = vdwg.mxu0
    %vm95 = vcmask 130048
    %v97 = vsel %vm95, %v62, 0
    %99 = vmatpush.msra.mxu0 0.0
    %100 = vmatpush.msra.mxu0 0.0
    %101 = vmatpush.msra.mxu0 0.0
    %102 = vmatpush.msra.mxu0 0.0
    %103 = vmatpush.msra.mxu0 0.0
    %104 = vmatpush.msra.mxu0 0.0
    %105 = vmatpush.msra.mxu0 0.0
    %106 = vmatpush.msra.mxu0 0.0
    %107 = vmatpush.msra.mxu0 0.0
    %108 = vmatpush.msra.mxu0 0.0
    %109 = vmatpush.msra.mxu0 0.0
    %110 = vmatpush.msra.mxu0 0.0
    %111 = vmatpush.msra.mxu0 0.0
    %112 = vmatpush.msra.mxu0 0.0
    %113 = vmatpush.msra.mxu0 %v64
    %114 = vmatpush.msra.mxu0 %v63
    %115 = vmatmul.f32.gmra.mxu0 %v97
    %v116 = vpop.f32.mrf.mxu0
    %v117 = vadd.f32 %v93, %v116
    %118 = vdwg.mxu0
    %v119 = vld [vmem:[%s4] sm:$0x1]
    %v121 = vperm.slane %v119, 0
    %v123 = vadd.f32 %v117, %v121
    %v124 = vmax.f32 %v123, 0.0
    %v125 = vld [vmem:[%s5] sm:$0xff]
    %v126 = vld [vmem:[%s5 + $0x8] sm:$0xff]
    %v127 = vld [vmem:[%s5 + $0x10] sm:$0xff]
    %v128 = vld [vmem:[%s5 + $0x18] sm:$0xff]
    %v129 = vld [vmem:[%s6] sm:$0x1]
    %v131 = vperm.slane %v129, 0
    %vm133 = vcmask 261120
    %v135 = vsel %vm133, %v124, 0
    %137 = vmatpush.msra.mxu0 0.0
    %138 = vmatpush.msra.mxu0 0.0
    %139 = vmatpush.msra.mxu0 0.0
    %140 = vmatpush.msra.mxu0 0.0
    %141 = vmatpush.msra.mxu0 0.0
    %142 = vmatpush.msra.mxu0 0.0
    %143 = vmatpush.msra.mxu0 0.0
    %144 = vmatpush.msra.mxu0 0.0
    %145 = vmatpush.msra.mxu0 0.0
    %146 = vmatpush.msra.mxu0 0.0
    %147 = vmatpush.msra.mxu0 0.0
    %148 = vmatpush.msra.mxu0 0.0
    %149 = vmatpush.msra.mxu0 %v128
    %150 = vmatpush.msra.mxu0 %v127
    %151 = vmatpush.msra.mxu0 %v126
    %152 = vmatpush.msra.mxu0 %v125
    %153 = vmatmul.f32.gmra.mxu0 %v135
    %v154 = vpop.f32.mrf.mxu0
    %v155 = vadd.f32 %v131, %v154
    %156 = vdwg.mxu0
    %v157 = vmax.f32 %v155, 0.0
    %v158 = vld [vmem:[%s7] sm:$0xff]
    %v159 = vld [vmem:[%s7 + $0x8] sm:$0xff]
    %v160 = vld [vmem:[%s7 + $0x10] sm:$0xff]
    %v161 = vld [vmem:[%s7 + $0x18] sm:$0xff]
    %v162 = vld [vmem:[#allocation2] sm:$0x1]
    %v164 = vperm.slane %v162, 0
    %v167 = vsel %vm133, %v157, 0
    %169 = vmatpush.msra.mxu0 0.0
    %170 = vmatpush.msra.mxu0 0.0
    %171 = vmatpush.msra.mxu0 0.0
    %172 = vmatpush.msra.mxu0 0.0
    %173 = vmatpush.msra.mxu0 0.0
    %174 = vmatpush.msra.mxu0 0.0
    %175 = vmatpush.msra.mxu0 0.0
    %176 = vmatpush.msra.mxu0 0.0
    %177 = vmatpush.msra.mxu0 0.0
    %178 = vmatpush.msra.mxu0 0.0
    %179 = vmatpush.msra.mxu0 0.0
    %180 = vmatpush.msra.mxu0 0.0
    %181 = vmatpush.msra.mxu0 %v161
    %182 = vmatpush.msra.mxu0 %v160
    %183 = vmatpush.msra.mxu0 %v159
    %184 = vmatpush.msra.mxu0 %v158
    %185 = vmatmul.f32.gmra.mxu0 %v167
    %v186 = vpop.f32.mrf.mxu0
    %v187 = vadd.f32 %v164, %v186
    %188 = vdwg.mxu0
    %vm189 = vcmask 7168
    %190 = vst.msk [vmem:[%s9] sm:$0xff] %vm189, %v187
    // Predicated region
    $region46: #{critic_forward.1} parent=1 // pred_check
      _
    $region47: #{critic_forward.1} parent=1 // pred_check_branch
      %192 = sbr.rel (0) target = $region49
    $region48: #{critic_forward.1} parent=1 // pred_region
      _
    $region49: #{critic_forward.1} parent=1 // pred_fallthru
      _
    // Predicated region
    $region50: #{critic_forward.1} parent=1 // pred_check
      _
    $region51: #{critic_forward.1} parent=1 // pred_check_branch
      %194 = sbr.rel (0) target = $region53
    $region52: #{critic_forward.1} parent=1 // pred_region
      _
    $region53: #{critic_forward.1} parent=1 // pred_fallthru
      _
    %195 = vsyncpa [#allocation4], 1
    %196 = vsyncpa [#allocation6], 1

</llo_original>
